<compile_context>
chip_gen: v5e
topology: v5e:2x2
jax: 0.10.0
libtpu: 0.0.40
codegen_flags: <defaults>
</compile_context>

<pallas_src>
from functools import partial

import jax
import jax.numpy as jnp
from jax.experimental import pallas as pl
from jax.experimental.pallas import tpu as pltpu

# TODO(synk): EPSILON() constant is not defined in the provided snippet;
# using 1e-8 (a common choice for this helper).
EPSILON = 1e-8

LANES = 128
SUBLANES = 8
MAX_TILE_ROWS = 1024   # (1024, 128) f32 block = 512 KiB per input per buffer
NUM_SHARDS = 2         # leading "parallel" grid axis -> 2-TC split on v7x


def _round_up(x, m):
    return ((x + m - 1) // m) * m


def _cdiv(a, b):
    return (a + b - 1) // b


def _bce_wo_labels_kernel(pos_ref, neg_ref, out_ref, acc_ref, *,
                          with_logits, n_pos, n_neg, inv_n_pos, inv_n_neg,
                          tile_rows, tiles_per_shard, eps):
    s = pl.program_id(0)   # shard (parallel across TensorCores on v7x)
    i = pl.program_id(1)   # row-tile within shard (reduction axis)

    @pl.when(i == 0)
    def _():
        acc_ref[...] = jnp.zeros_like(acc_ref)

    pos = pos_ref[...].astype(jnp.float32)
    neg = neg_ref[...].astype(jnp.float32)

    if with_logits:
        # -log(sigmoid(x)) = softplus(-x); -log(1 - sigmoid(x)) = softplus(x)
        # Stable form: softplus(z) = log1p(exp(-|z|)) + max(z, 0).
        # (Drops the +eps inside the log; strictly more accurate than
        #  sigmoid-then-log+eps, differs from it only at ~eps level.)
        sp_pos = jnp.log1p(jnp.exp(-jnp.abs(pos)))
        sp_neg = jnp.log1p(jnp.exp(-jnp.abs(neg)))
        pos_term = sp_pos + jnp.maximum(-pos, 0.0)   # softplus(-pos)
        neg_term = sp_neg + jnp.maximum(neg, 0.0)    # softplus(neg)
    else:
        pos_term = -jnp.log(pos + eps)
        neg_term = -jnp.log(1.0 - neg + eps)

    # Mask out padded elements (flat index >= true element count) so they
    # contribute exactly 0 to either mean.
    base_row = (s * tiles_per_shard + i) * tile_rows
    row_ids = jax.lax.broadcasted_iota(jnp.int32, (tile_rows, LANES), 0)
    lane_ids = jax.lax.broadcasted_iota(jnp.int32, (tile_rows, LANES), 1)
    flat_idx = (base_row + row_ids) * LANES + lane_ids
    pos_term = jnp.where(flat_idx < n_pos, pos_term, 0.0)
    neg_term = jnp.where(flat_idx < n_neg, neg_term, 0.0)

    # Elementwise (VALU) accumulation; fold the 1/N mean factors per element.
    acc_ref[...] += pos_term * inv_n_pos + neg_term * inv_n_neg

    # Final step of this shard: reduce the accumulator down the sublane axis
    # to a single (8, 128) partial block (unrolled vreg adds, once per shard).
    @pl.when(i == pl.num_programs(1) - 1)
    def _():
        partial_sum = acc_ref[0:SUBLANES, :]
        for r in range(SUBLANES, tile_rows, SUBLANES):
            partial_sum = partial_sum + acc_ref[r:r + SUBLANES, :]
        out_ref[...] = partial_sum


def _to_rows(x, total_rows):
    """Flatten to a lane-dense (rows, 128) slab, zero-padding the tail."""
    flat = jnp.ravel(x)
    pad = total_rows * LANES - flat.size
    if pad:
        flat = jnp.pad(flat, (0, pad))
    return flat.reshape(total_rows, LANES)


def bce_wo_labels_loss(pos_preds, neg_preds, *, with_logits=False):
    """Pallas implementation of BCEWOLabelsLoss.forward (both preds present)."""
    # TODO(synk): the PyTorch module also accepts pos_preds/neg_preds == None;
    # this wrapper requires both tensors.
    n_pos = int(pos_preds.size)
    n_neg = int(neg_preds.size)

    rows_needed = max(_cdiv(n_pos, LANES), _cdiv(n_neg, LANES))
    tile_rows = min(MAX_TILE_ROWS,
                    _round_up(_cdiv(rows_needed, NUM_SHARDS), SUBLANES))
    rows_per_shard = _round_up(_cdiv(rows_needed, NUM_SHARDS), tile_rows)
    tiles_per_shard = rows_per_shard // tile_rows
    total_rows = NUM_SHARDS * rows_per_shard

    pos2d = _to_rows(pos_preds, total_rows)
    neg2d = _to_rows(neg_preds, total_rows)

    kernel = partial(
        _bce_wo_labels_kernel,
        with_logits=with_logits,
        n_pos=n_pos, n_neg=n_neg,
        inv_n_pos=1.0 / float(n_pos), inv_n_neg=1.0 / float(n_neg),
        tile_rows=tile_rows, tiles_per_shard=tiles_per_shard,
        eps=EPSILON,
    )

    in_idx = lambda s, i: (s * tiles_per_shard + i, 0)

    out = pl.pallas_call(
        kernel,
        out_shape=jax.ShapeDtypeStruct((NUM_SHARDS * SUBLANES, LANES),
                                       jnp.float32),
        grid_spec=pltpu.PrefetchScalarGridSpec(
            num_scalar_prefetch=0,
            grid=(NUM_SHARDS, tiles_per_shard),
            in_specs=[
                pl.BlockSpec((tile_rows, LANES), in_idx),
                pl.BlockSpec((tile_rows, LANES), in_idx),
            ],
            out_specs=pl.BlockSpec((SUBLANES, LANES), lambda s, i: (s, 0)),
            scratch_shapes=[pltpu.VMEM((tile_rows, LANES), jnp.float32)],
        ),
        compiler_params=pltpu.CompilerParams(
            dimension_semantics=("parallel", "arbitrary")),
    )(pos2d, neg2d)

    # Single tiny cross-lane reduce of the per-shard partial blocks.
    return jnp.sum(out)


def bce_wo_labels_loss_ref(pos_preds, neg_preds, *, with_logits=False):
    pos = pos_preds.astype(jnp.float32)
    neg = neg_preds.astype(jnp.float32)
    if with_logits:
        pos = jax.nn.sigmoid(pos)
        neg = jax.nn.sigmoid(neg)
    loss = -jnp.log(pos + EPSILON).mean()
    loss = loss + -jnp.log(1.0 - neg + EPSILON).mean()
    return loss


if __name__ == "__main__":
    key = jax.random.PRNGKey(0)
    k_pos, k_neg = jax.random.split(key)

    # Small shapes consistent with arbitrary prediction tensors, e.g. (B,C,H,W).
    pos_shape = (2, 4, 16, 16)   # 2048 elements
    neg_shape = (2, 4, 16, 16)

    # with_logits=True path: raw logits in.
    pos_logits = jax.random.normal(k_pos, pos_shape, dtype=jnp.float32)
    neg_logits = jax.random.normal(k_neg, neg_shape, dtype=jnp.float32)

    loss_logits = jax.block_until_ready(
        bce_wo_labels_loss(pos_logits, neg_logits, with_logits=True))
    ref_logits = bce_wo_labels_loss_ref(pos_logits, neg_logits,
                                        with_logits=True)

    # with_logits=False path: probabilities in (0, 1).
    pos_prob = jax.nn.sigmoid(pos_logits)
    neg_prob = jax.nn.sigmoid(neg_logits)
    loss_prob = jax.block_until_ready(
        bce_wo_labels_loss(pos_prob, neg_prob, with_logits=False))
    ref_prob = bce_wo_labels_loss_ref(pos_prob, neg_prob, with_logits=False)

    assert jnp.allclose(loss_logits, ref_logits, rtol=1e-5, atol=1e-5), \
        (loss_logits, ref_logits)
    assert jnp.allclose(loss_prob, ref_prob, rtol=1e-5, atol=1e-5), \
        (loss_prob, ref_prob)

    print("KERNEL_OK")
</pallas_src>

<mosaic_0001>
module attributes {stable_mosaic.version = 11 : i64} {
  func.func @_bce_wo_labels_kernel(%arg0: i32, %arg1: i32, %arg2: memref<8x128xf32, #tpu.memory_space<vmem>>, %arg3: memref<8x128xf32, #tpu.memory_space<vmem>>, %arg4: memref<8x128xf32, #tpu.memory_space<vmem>>, %arg5: memref<8x128xf32, #tpu.memory_space<vmem>>) attributes {dimension_semantics = [#tpu.dimension_semantics<parallel>, #tpu.dimension_semantics<arbitrary>], iteration_bounds = array<i64: 2, 1>, scalar_prefetch = 0 : i64, scratch_operands = 1 : i64, tpu.core_type = #tpu.core_type<tc>, window_params = [{transform_indices = @transform_0, window_bounds = array<i64: 8, 128>}, {transform_indices = @transform_1, window_bounds = array<i64: 8, 128>}, {transform_indices = @transform_2, window_bounds = array<i64: 8, 128>}]} {
    %c0_i32 = arith.constant 0 : i32
    %0 = arith.cmpi eq, %arg1, %c0_i32 : i32
    %1 = arith.extui %0 : i1 to i32
    %c0_i32_0 = arith.constant 0 : i32
    %2 = arith.cmpi ne, %1, %c0_i32_0 : i32
    scf.if %2 {
      %cst_19 = arith.constant 0.000000e+00 : f32
      %52 = vector.broadcast %cst_19 : f32 to vector<8x128xf32>
      %c0_20 = arith.constant 0 : index
      %c0_21 = arith.constant 0 : index
      %53 = vector.load %arg5[%c0_20, %c0_21] : memref<8x128xf32, #tpu.memory_space<vmem>>, vector<8x128xf32>
      tpu.vector_store %arg5[%c0_20, %c0_21], %52 {strides = array<i32>} : memref<8x128xf32, #tpu.memory_space<vmem>>, vector<8x128xf32>,
    } else {
    }
    %c0 = arith.constant 0 : index
    %c0_1 = arith.constant 0 : index
    %3 = vector.load %arg2[%c0, %c0_1] : memref<8x128xf32, #tpu.memory_space<vmem>>, vector<8x128xf32>
    %c0_2 = arith.constant 0 : index
    %c0_3 = arith.constant 0 : index
    %4 = vector.load %arg3[%c0_2, %c0_3] : memref<8x128xf32, #tpu.memory_space<vmem>>, vector<8x128xf32>
    %5 = math.absf %3 : vector<8x128xf32>
    %cst = arith.constant 0.000000e+00 : f32
    %6 = vector.broadcast %cst : f32 to vector<8x128xf32>
    %7 = arith.subf %6, %5 : vector<8x128xf32>
    %8 = math.exp %7 : vector<8x128xf32>
    %9 = math.log1p %8 : vector<8x128xf32>
    %10 = math.absf %4 : vector<8x128xf32>
    %cst_4 = arith.constant 0.000000e+00 : f32
    %11 = vector.broadcast %cst_4 : f32 to vector<8x128xf32>
    %12 = arith.subf %11, %10 : vector<8x128xf32>
    %13 = math.exp %12 : vector<8x128xf32>
    %14 = math.log1p %13 : vector<8x128xf32>
    %cst_5 = arith.constant 0.000000e+00 : f32
    %15 = vector.broadcast %cst_5 : f32 to vector<8x128xf32>
    %16 = arith.subf %15, %3 : vector<8x128xf32>
    %cst_6 = arith.constant 0.000000e+00 : f32
    %17 = vector.broadcast %cst_6 : f32 to vector<8x128xf32>
    %18 = arith.maximumf %16, %17 : vector<8x128xf32>
    %19 = arith.addf %9, %18 : vector<8x128xf32>
    %cst_7 = arith.constant 0.000000e+00 : f32
    %20 = vector.broadcast %cst_7 : f32 to vector<8x128xf32>
    %21 = arith.maximumf %4, %20 : vector<8x128xf32>
    %22 = arith.addf %14, %21 : vector<8x128xf32>
    %c1_i32 = arith.constant 1 : i32
    %23 = arith.muli %arg0, %c1_i32 : i32
    %24 = arith.addi %23, %arg1 : i32
    %c8_i32 = arith.constant 8 : i32
    %25 = arith.muli %24, %c8_i32 : i32
    %26 = tpu.iota {dimensions = array<i32: 0>} : vector<8x128xi32>
    %27 = tpu.iota {dimensions = array<i32: 1>} : vector<8x128xi32>
    %28 = vector.broadcast %25 : i32 to vector<8x128xi32>
    %29 = arith.addi %28, %26 : vector<8x128xi32>
    %c128_i32 = arith.constant 128 : i32
    %30 = vector.broadcast %c128_i32 : i32 to vector<8x128xi32>
    %31 = arith.muli %29, %30 : vector<8x128xi32>
    %32 = arith.addi %31, %27 : vector<8x128xi32>
    %c2048_i32 = arith.constant 2048 : i32
    %33 = vector.broadcast %c2048_i32 : i32 to vector<8x128xi32>
    %34 = arith.cmpi slt, %32, %33 : vector<8x128xi32>
    %cst_8 = arith.constant 0.000000e+00 : f32
    %35 = vector.broadcast %cst_8 : f32 to vector<8x128xf32>
    %36 = arith.select %34, %19, %35 : vector<8x128xi1>, vector<8x128xf32>
    %c2048_i32_9 = arith.constant 2048 : i32
    %37 = vector.broadcast %c2048_i32_9 : i32 to vector<8x128xi32>
    %38 = arith.cmpi slt, %32, %37 : vector<8x128xi32>
    %cst_10 = arith.constant 0.000000e+00 : f32
    %39 = vector.broadcast %cst_10 : f32 to vector<8x128xf32>
    %40 = arith.select %38, %22, %39 : vector<8x128xi1>, vector<8x128xf32>
    %c0_11 = arith.constant 0 : index
    %c0_12 = arith.constant 0 : index
    %41 = vector.load %arg5[%c0_11, %c0_12] : memref<8x128xf32, #tpu.memory_space<vmem>>, vector<8x128xf32>
    %cst_13 = arith.constant 4.8828125E-4 : f32
    %42 = vector.broadcast %cst_13 : f32 to vector<8x128xf32>
    %43 = arith.mulf %36, %42 : vector<8x128xf32>
    %cst_14 = arith.constant 4.8828125E-4 : f32
    %44 = vector.broadcast %cst_14 : f32 to vector<8x128xf32>
    %45 = arith.mulf %40, %44 : vector<8x128xf32>
    %46 = arith.addf %43, %45 : vector<8x128xf32>
    %47 = arith.addf %41, %46 : vector<8x128xf32>
    %c0_15 = arith.constant 0 : index
    %c0_16 = arith.constant 0 : index
    %48 = vector.load %arg5[%c0_15, %c0_16] : memref<8x128xf32, #tpu.memory_space<vmem>>, vector<8x128xf32>
    tpu.vector_store %arg5[%c0_15, %c0_16], %47 {strides = array<i32>} : memref<8x128xf32, #tpu.memory_space<vmem>>, vector<8x128xf32>,
    %c0_i32_17 = arith.constant 0 : i32
    %49 = arith.cmpi eq, %arg1, %c0_i32_17 : i32
    %50 = arith.extui %49 : i1 to i32
    %c0_i32_18 = arith.constant 0 : i32
    %51 = arith.cmpi ne, %50, %c0_i32_18 : i32
    scf.if %51 {
      %c0_19 = arith.constant 0 : index
      %c0_20 = arith.constant 0 : index
      %52 = vector.load %arg5[%c0_19, %c0_20] : memref<8x128xf32, #tpu.memory_space<vmem>>, vector<8x128xf32>
      %c0_21 = arith.constant 0 : index
      %c0_22 = arith.constant 0 : index
      %53 = vector.load %arg4[%c0_21, %c0_22] : memref<8x128xf32, #tpu.memory_space<vmem>>, vector<8x128xf32>
      tpu.vector_store %arg4[%c0_21, %c0_22], %52 {strides = array<i32>} : memref<8x128xf32, #tpu.memory_space<vmem>>, vector<8x128xf32>,
    } else {
    }
    return
  }
  func.func @transform_0(%arg0: i32, %arg1: i32) -> (i32, i32) {
    %c1_i32 = arith.constant 1 : i32
    %0 = arith.muli %arg0, %c1_i32 : i32
    %1 = arith.addi %0, %arg1 : i32
    %c0_i32 = arith.constant 0 : i32
    %c0_i32_0 = arith.constant 0 : i32
    return %1, %c0_i32 : i32, i32
  }
  func.func @transform_1(%arg0: i32, %arg1: i32) -> (i32, i32) {
    %c1_i32 = arith.constant 1 : i32
    %0 = arith.muli %arg0, %c1_i32 : i32
    %1 = arith.addi %0, %arg1 : i32
    %c0_i32 = arith.constant 0 : i32
    %c0_i32_0 = arith.constant 0 : i32
    return %1, %c0_i32 : i32, i32
  }
  func.func @transform_2(%arg0: i32, %arg1: i32) -> (i32, i32) {
    %c0_i32 = arith.constant 0 : i32
    %c0_i32_0 = arith.constant 0 : i32
    return %arg0, %c0_i32 : i32, i32
  }
}

</mosaic_0001>

<llo_original>
// kernel: tpu_custom_call.1
$region0: #{tpu_custom_call.1}
  #allocation0 [shape = 'u32[]', space=smem, size = 0x4, offset = 0x4, fixed_abs, tag = 'smem constant byte address 0x4 - core index']
  #allocation1 [shape = 'u32[72,128]{1,0:T(1,128)}', space=vmem, size = 0x9000, scoped, tag = 'internal scratch']
  #allocation2 [shape = 'f32[8,128]{1,0:T(8,128)}', space=vmem, size = 0x1000, scoped, tag = 'scratch operand']
  %s0 = inlined_call_operand.hbm [shape: f32[16,128], index: 0, kind: input, shape index: {}]
  %s1 = inlined_call_operand.hbm [shape: f32[16,128], index: 1, kind: input, shape index: {}]
  %s2 = inlined_call_operand.hbm [shape: f32[16,128], index: 2, kind: output, shape index: {}]
  %s3 = sld [smem:[#allocation0]]
  $region57: #{tpu_custom_call.1} parent=0
    _
  %s5 = ssub.s32 1, %s3
  %s6 = scalar_select 0, %s5, %s3
  $region1: #{tpu_custom_call.1} parent=0
    #allocation3 [shape = 'u8[8192]{0}', space=vmem, size = 0x2000, scoped, tag = 'input window, operand 0']
    #allocation4 [shape = 's32[2]{0}', space=sflag, size = 0x8, scoped, tag = 'scoped memory for tpu_custom_call.1']
    #allocation5 [shape = 's32[2]{0}', space=sflag, size = 0x8, scoped, tag = 'scoped memory for tpu_custom_call.1']
    #allocation6 [shape = 'u8[8192]{0}', space=vmem, size = 0x2000, scoped, tag = 'input window, operand 1']
    #allocation7 [shape = 's32[2]{0}', space=sflag, size = 0x8, scoped, tag = 'scoped memory for tpu_custom_call.1']
    #allocation8 [shape = 'u8[8192]{0}', space=vmem, size = 0x2000, scoped, tag = 'output window, operand 0']
    %7 = vsyncpa [#allocation4], 0
    %s8 = scalar_lea.sflag [#allocation4], 1
    %9 = vsyncpa %s8, 0
    %10 = vsyncpa [#allocation7], 0
    %s11 = scalar_lea.sflag [#allocation7], 1
    %12 = vsyncpa %s11, 0
    %13 = vsyncpa [#allocation5], 0
    %s14 = scalar_lea.sflag [#allocation5], 1
    %15 = vsyncpa %s14, 0
    loop: start=0, step=1, limit=4
    $region2: #{tpu_custom_call.1} parent=1 // loop_pre_header
      _
    $region3: #{tpu_custom_call.1} parent=1 // loop_header
      %s17 = sphi 0, %s21
      %p18 = scmp.ge.s32.totalorder %s17, 4
      %s24 = sphi 0, %s36
      %s25 = sphi 0, %s32
      %s26 = sphi 0, %s24
      %s27 = sphi 0, %s25
      %s28 = sphi 0, %s26
      %s29 = sphi 0, %s27
      %s41 = sphi 0, %s43
      %s44 = sphi 0, %s41
      %s45 = sphi 0, %s44
      %s61 = sphi 0, %s45
      %s69 = sphi 0, %s71
      %s72 = sphi 0, %s69
      %s73 = sphi 0, %s72
      %s89 = sphi 0, %s73
      %s95 = sphi 0, %s97
      %s98 = sphi 0, %s95
      %s99 = sphi 0, %s98
      %s115 = sphi 0, %s99
    $region4: #{tpu_custom_call.1} parent=1 // loop_header_branch
      %20 = sbr.rel (%p18) target = $region8
    $region5: #{tpu_custom_call.1} parent=1 // loop_body
      %s22 = ssub.s32 %s17, 1
      %s23 = ssub.s32 %s17, 2
      %s30 = sadd.s32 1, %s25
      %p31 = scmp.ge.s32.totalorder %s30, 1
      %s32 = scalar_select %p31, 0, %s30
      %s33 = sadd.s32 1, %s24
      %s34 = scalar_select %p31, %s33, %s24
      %p35 = scmp.ge.s32.totalorder %s34, 2
      %s36 = scalar_select %p35, 0, %s34
      %s37 = sadd.s32 %s24, %s25
      %s38 = sadd.s32 %s36, %s32
      %s39 = ssub.s32 %s37, %s38
      %p40 = scmp.eq.s32.totalorder %s39, 0
      %s42 = sadd.s32 %s41, 1
      %s43 = scalar_select %p40, %s41, %s42
      %p46 = pneg %p40
      %p47 = scmp.eq.s32.totalorder %s17, 1
      %p48 = por %p46, %p47
      %p49 = scmp.ne.s32.totalorder %s41, %s44
      %p50 = scmp.eq.s32.totalorder %s17, 0
      %p51 = por %p49, %p50
      %p52 = scmp.ne.s32.totalorder %s41, %s44
      %p53 = scmp.eq.s32.totalorder %s22, 1
      %p54 = por %p52, %p53
      %p55 = scmp.ne.s32.totalorder %s44, %s45
      %p56 = scmp.eq.s32.totalorder %s22, 0
      %p57 = por %p55, %p56
      %p58 = scmp.ne.s32.totalorder %s44, %s45
      %p59 = scmp.eq.s32.totalorder %s23, 1
      %p60 = por %p58, %p59
      %p62 = scmp.ne.s32.totalorder %s45, %s61
      %p63 = scmp.eq.s32.totalorder %s23, 0
      %p64 = por %p62, %p63
      %s65 = sadd.s32 %s24, %s25
      %s66 = sadd.s32 %s36, %s32
      %s67 = ssub.s32 %s65, %s66
      %p68 = scmp.eq.s32.totalorder %s67, 0
      %s70 = sadd.s32 %s69, 1
      %s71 = scalar_select %p68, %s69, %s70
      %p74 = pneg %p68
      %p75 = scmp.eq.s32.totalorder %s17, 1
      %p76 = por %p74, %p75
      %p77 = scmp.ne.s32.totalorder %s69, %s72
      %p78 = scmp.eq.s32.totalorder %s17, 0
      %p79 = por %p77, %p78
      %p80 = scmp.ne.s32.totalorder %s69, %s72
      %p81 = scmp.eq.s32.totalorder %s22, 1
      %p82 = por %p80, %p81
      %p83 = scmp.ne.s32.totalorder %s72, %s73
      %p84 = scmp.eq.s32.totalorder %s22, 0
      %p85 = por %p83, %p84
      %p86 = scmp.ne.s32.totalorder %s72, %s73
      %p87 = scmp.eq.s32.totalorder %s23, 1
      %p88 = por %p86, %p87
      %p90 = scmp.ne.s32.totalorder %s73, %s89
      %p91 = scmp.eq.s32.totalorder %s23, 0
      %p92 = por %p90, %p91
      %s93 = ssub.s32 %s24, %s36
      %p94 = scmp.eq.s32.totalorder %s93, 0
      %s96 = sadd.s32 %s95, 1
      %s97 = scalar_select %p94, %s95, %s96
      %p100 = pneg %p94
      %p101 = scmp.eq.s32.totalorder %s17, 1
      %p102 = por %p100, %p101
      %p103 = scmp.ne.s32.totalorder %s95, %s98
      %p104 = scmp.eq.s32.totalorder %s17, 0
      %p105 = por %p103, %p104
      %p106 = scmp.ne.s32.totalorder %s95, %s98
      %p107 = scmp.eq.s32.totalorder %s22, 1
      %p108 = por %p106, %p107
      %p109 = scmp.ne.s32.totalorder %s98, %s99
      %p110 = scmp.eq.s32.totalorder %s22, 0
      %p111 = por %p109, %p110
      %p112 = scmp.ne.s32.totalorder %s98, %s99
      %p113 = scmp.eq.s32.totalorder %s23, 1
      %p114 = por %p112, %p113
      %p116 = scmp.ne.s32.totalorder %s99, %s115
      %p117 = scmp.eq.s32.totalorder %s23, 0
      %p118 = por %p116, %p117
      %p119 = scmp.le.s32.totalorder 1, %s17
      %p120 = scmp.lt.s32.totalorder %s17, 3
      %p121 = pnand %p119, %p120
      %p122 = pneg %p121
      // Predicated region
      $region9: #{tpu_custom_call.1} parent=5 // pred_check
        _
      $region10: #{tpu_custom_call.1} parent=5 // pred_check_branch
        %124 = sbr.rel (%p121) target = $region12
      $region11: #{tpu_custom_call.1} parent=5 // pred_region
        %s125 = ssub.s32 %s17, 1
      $region12: #{tpu_custom_call.1} parent=5 // pred_fallthru
        _
      %p126 = scmp.lt.s32.totalorder %s17, 2
      // Predicated region
      $region13: #{tpu_custom_call.1} parent=5 // pred_check
        %p127 = pneg %p126
      $region14: #{tpu_custom_call.1} parent=5 // pred_check_branch
        %129 = sbr.rel (%p127) target = $region16
      $region15: #{tpu_custom_call.1} parent=5 // pred_region
        // Predicated region
        $region17: #{tpu_custom_call.1} parent=15 // pred_check
          %p130 = pneg %p51
        $region18: #{tpu_custom_call.1} parent=15 // pred_check_branch
          %132 = sbr.rel (%p130) target = $region20
        $region19: #{tpu_custom_call.1} parent=15 // pred_region
          %s133 = sand.u32 %s41, 1
          %s134 = scalar_lea.sflag [#allocation4], %s133
          %s135 = sand.u32 %s41, 1
          %s136 = smul.addr %s135, 8
          %s137 = scalar_lea.vmem [#allocation3], %s136
          %s138 = sadd.s32 %s24, %s25
          %140 = vsyncadd %s134, 0
          %s141 = smul.addr %s138, 8
          %s142 = scalar_lea.hbm %s0, %s141
          %s144 = sshll.u32 %s142, 4
          %s145 = int_to_ptr.hbm [resolvable:$true] %s144
          %s146 = sshll.u32 %s137, 4
          %s147 = int_to_ptr.vmem [resolvable:$true] %s146
          %149 = dma.hbm_to_vmem [thread:$0]  %s145, 128, %s147, %s134
        $region20: #{tpu_custom_call.1} parent=15 // pred_fallthru
          _
        // Predicated region
        $region21: #{tpu_custom_call.1} parent=15 // pred_check
          %p150 = pneg %p79
        $region22: #{tpu_custom_call.1} parent=15 // pred_check_branch
          %152 = sbr.rel (%p150) target = $region24
        $region23: #{tpu_custom_call.1} parent=15 // pred_region
          %s153 = sand.u32 %s69, 1
          %s154 = scalar_lea.sflag [#allocation7], %s153
          %s155 = sand.u32 %s69, 1
          %s156 = smul.addr %s155, 8
          %s157 = scalar_lea.vmem [#allocation6], %s156
          %s158 = sadd.s32 %s24, %s25
          %160 = vsyncadd %s154, 0
          %s161 = smul.addr %s158, 8
          %s162 = scalar_lea.hbm %s1, %s161
          %s164 = sshll.u32 %s162, 4
          %s165 = int_to_ptr.hbm [resolvable:$true] %s164
          %s166 = sshll.u32 %s157, 4
          %s167 = int_to_ptr.vmem [resolvable:$true] %s166
          %169 = dma.hbm_to_vmem [thread:$0]  %s165, 128, %s167, %s154
        $region24: #{tpu_custom_call.1} parent=15 // pred_fallthru
          _
      $region16: #{tpu_custom_call.1} parent=5 // pred_fallthru
        _
      %p170 = scmp.le.s32.totalorder 1, %s17
      %p171 = scmp.lt.s32.totalorder %s17, 3
      %p172 = pnand %p170, %p171
      %p173 = pneg %p172
      // Predicated region
      $region25: #{tpu_custom_call.1} parent=5 // pred_check
        _
      $region26: #{tpu_custom_call.1} parent=5 // pred_check_branch
        %175 = sbr.rel (%p172) target = $region28
      $region27: #{tpu_custom_call.1} parent=5 // pred_region
        %s176 = ssub.s32 %s17, 1
        %s177 = sand.u32 %s44, 1
        %s178 = scalar_lea.sflag [#allocation4], %s177
        %s179 = sand.u32 %s44, 1
        %s180 = smul.addr %s179, 8
        %s181 = scalar_lea.vmem [#allocation3], %s180
        // Predicated region
        $region29: #{tpu_custom_call.1} parent=27 // pred_check
          %p182 = pneg %p57
        $region30: #{tpu_custom_call.1} parent=27 // pred_check_branch
          %184 = sbr.rel (%p182) target = $region32
        $region31: #{tpu_custom_call.1} parent=27 // pred_region
          %186 = dma.done %s178, 128
        $region32: #{tpu_custom_call.1} parent=27 // pred_fallthru
          _
        %s187 = sand.u32 %s72, 1
        %s188 = scalar_lea.sflag [#allocation7], %s187
        %s189 = sand.u32 %s72, 1
        %s190 = smul.addr %s189, 8
        %s191 = scalar_lea.vmem [#allocation6], %s190
        // Predicated region
        $region33: #{tpu_custom_call.1} parent=27 // pred_check
          %p192 = pneg %p85
        $region34: #{tpu_custom_call.1} parent=27 // pred_check_branch
          %194 = sbr.rel (%p192) target = $region36
        $region35: #{tpu_custom_call.1} parent=27 // pred_region
          %196 = dma.done %s188, 128
        $region36: #{tpu_custom_call.1} parent=27 // pred_fallthru
          _
        %s197 = sand.u32 %s44, 1
        %s198 = scalar_lea.sflag [#allocation4], %s197
        %s199 = sand.u32 %s44, 1
        %s200 = smul.addr %s199, 8
        %s201 = scalar_lea.vmem [#allocation3], %s200
        %p202 = pneg %p57
        %p203 = pneg %p54
        %s204 = sand.u32 %s72, 1
        %s205 = scalar_lea.sflag [#allocation7], %s204
        %s206 = sand.u32 %s72, 1
        %s207 = smul.addr %s206, 8
        %s208 = scalar_lea.vmem [#allocation6], %s207
        %p209 = pneg %p85
        %p210 = pneg %p82
        %p211 = pneg %p111
        %p212 = pneg %p108
        %s213 = sand.u32 %s98, 1
        %s214 = scalar_lea.sflag [#allocation5], %s213
        %s215 = sand.u32 %s98, 1
        %s216 = smul.addr %s215, 8
        %s217 = scalar_lea.vmem [#allocation8], %s216
        %s218 = sadd.s32 %s26, %s27
        %s219 = sadd.s32 %s26, %s27
        %p220 = scmp.eq.s32.totalorder %s27, 0
        // Predicated region
        $region37: #{tpu_custom_call.1} parent=27 // pred_check
          %p221 = pneg %p220
        $region38: #{tpu_custom_call.1} parent=27 // pred_check_branch
          %223 = sbr.rel (%p221) target = $region40
        $region39: #{tpu_custom_call.1} parent=27 // pred_region
          %224 = vst [vmem:[#allocation2] sm:$0xff] 0.0
        $region40: #{tpu_custom_call.1} parent=27 // pred_fallthru
          _
        %v225 = vld [vmem:[%s181] sm:$0xff]
        %v226 = vld [vmem:[%s191] sm:$0xff]
        %v227 = vand.u32 2147483647, %v225
        %v228 = vsub.f32 0.0, %v227
        %v229 = vmul.f32 %v228, 1.442695
        %v230 = vpow.pop %v229
        %v231 = vadd.f32 %v230, 1.0
        %v232 = vlog2.pop %v231
        %v233 = vmul.f32 %v232, 0.6931472
        %v234 = vmul.f32 -0.5, %v230
        %v235 = vadd.f32 %v234, 1.0
        %v236 = vmul.f32 %v235, %v230
        %v237 = vand.u32 2147483647, %v230
        %vm238 = vcmp.lt.f32.partialorder %v237, 0.0004427343
        %v239 = vsel %vm238, %v236, %v233
        %v240 = vand.u32 2147483647, %v226
        %v241 = vsub.f32 0.0, %v240
        %v242 = vmul.f32 %v241, 1.442695
        %v243 = vpow.pop %v242
        %v244 = vadd.f32 %v243, 1.0
        %v245 = vlog2.pop %v244
        %v246 = vmul.f32 %v245, 0.6931472
        %v247 = vmul.f32 -0.5, %v243
        %v248 = vadd.f32 %v247, 1.0
        %v249 = vmul.f32 %v248, %v243
        %v250 = vand.u32 2147483647, %v243
        %vm251 = vcmp.lt.f32.partialorder %v250, 0.0004427343
        %v252 = vsel %vm251, %v249, %v246
        %v253 = vsub.f32 0.0, %v225
        %v254 = vmax.f32 %v253, 0.0
        %v255 = vadd.f32 %v239, %v254
        %v256 = vmax.f32 %v226, 0.0
        %v257 = vadd.f32 %v252, %v256
        %s258 = sadd.s32 %s26, %s27
        %s259 = smul.u32 %s258, 8
        %v260 = vlaneseq
        %v261 = vshrl.u32 %v260, 7
        %v262 = vlaneseq
        %v263 = vand.u32 %v262, 127
        %v264 = vstv %s259
        %v265 = vadd.s32 %v264, %v261
        %v266 = vmul.u32 %v265, 128
        %v267 = vadd.s32 %v266, %v263
        %vm268 = vcmp.lt.s32.totalorder %v267, 2048
        %v269 = vsel %vm268, %v255, 0.0
        %v270 = vsel %vm268, %v257, 0.0
        %v271 = vld [vmem:[#allocation2] sm:$0xff]
        %v272 = vmul.f32 %v269, 0.00048828125
        %v273 = vmul.f32 %v270, 0.00048828125
        %v274 = vadd.f32 %v272, %v273
        %v275 = vadd.f32 %v271, %v274
        %276 = vst [vmem:[#allocation2] sm:$0xff] %v275
        // Predicated region
        $region41: #{tpu_custom_call.1} parent=27 // pred_check
          %p277 = pneg %p220
        $region42: #{tpu_custom_call.1} parent=27 // pred_check_branch
          %279 = sbr.rel (%p277) target = $region44
        $region43: #{tpu_custom_call.1} parent=27 // pred_region
          %v280 = vld [vmem:[#allocation2] sm:$0xff]
          %281 = vst [vmem:[%s217] sm:$0xff] %v280
        $region44: #{tpu_custom_call.1} parent=27 // pred_fallthru
          _
        %s282 = sand.u32 %s98, 1
        %s283 = scalar_lea.sflag [#allocation5], %s282
        %s284 = sand.u32 %s98, 1
        %s285 = smul.addr %s284, 8
        %s286 = scalar_lea.vmem [#allocation8], %s285
        // Predicated region
        $region45: #{tpu_custom_call.1} parent=27 // pred_check
          %p287 = pneg %p108
        $region46: #{tpu_custom_call.1} parent=27 // pred_check_branch
          %289 = sbr.rel (%p287) target = $region48
        $region47: #{tpu_custom_call.1} parent=27 // pred_region
          %291 = vsyncadd %s283, 0
          %s292 = smul.addr %s26, 8
          %s293 = scalar_lea.hbm %s2, %s292
          %s295 = sshll.u32 %s286, 4
          %s296 = int_to_ptr.vmem [resolvable:$true] %s295
          %s297 = sshll.u32 %s293, 4
          %s298 = int_to_ptr.hbm [resolvable:$true] %s297
          %300 = dma.vmem_to_hbm [thread:$0]  %s296, 128, %s298, %s283
        $region48: #{tpu_custom_call.1} parent=27 // pred_fallthru
          _
      $region28: #{tpu_custom_call.1} parent=5 // pred_fallthru
        _
      %p301 = scmp.le.s32.totalorder 2, %s17
      // Predicated region
      $region49: #{tpu_custom_call.1} parent=5 // pred_check
        %p302 = pneg %p301
      $region50: #{tpu_custom_call.1} parent=5 // pred_check_branch
        %304 = sbr.rel (%p302) target = $region52
      $region51: #{tpu_custom_call.1} parent=5 // pred_region
        %s305 = ssub.s32 %s17, 2
        // Predicated region
        $region53: #{tpu_custom_call.1} parent=51 // pred_check
          %p306 = pneg %p114
        $region54: #{tpu_custom_call.1} parent=51 // pred_check_branch
          %308 = sbr.rel (%p306) target = $region56
        $region55: #{tpu_custom_call.1} parent=51 // pred_region
          %s309 = sand.u32 %s99, 1
          %s310 = scalar_lea.sflag [#allocation5], %s309
          %s311 = sand.u32 %s99, 1
          %s312 = smul.addr %s311, 8
          %s313 = scalar_lea.vmem [#allocation8], %s312
          %315 = dma.done %s310, 128
        $region56: #{tpu_custom_call.1} parent=51 // pred_fallthru
          _
      $region52: #{tpu_custom_call.1} parent=5 // pred_fallthru
        _
    $region6: #{tpu_custom_call.1} parent=1 // loop_footer
      %s21 = sadd.s32 1, %s17
    $region7: #{tpu_custom_call.1} parent=1 // loop_footer_branch
      %16 = sbr.rel target = $region3
    $region8: #{tpu_custom_call.1} parent=1 // loop_exit
      _
    %316 = vsyncpa [#allocation4], 1
    %s317 = scalar_lea.sflag [#allocation4], 1
    %318 = vsyncpa %s317, 1
    %319 = vsyncpa [#allocation7], 1
    %s320 = scalar_lea.sflag [#allocation7], 1
    %321 = vsyncpa %s320, 1
    %322 = vsyncpa [#allocation5], 1
    %s323 = scalar_lea.sflag [#allocation5], 1
    %324 = vsyncpa %s323, 1

</llo_original>
